<compile_context>
chip_gen: v5e
topology: v5e:2x2
jax: 0.10.0
libtpu: 0.0.40
codegen_flags: <defaults>
</compile_context>

<pallas_src>
import functools

import jax
import jax.numpy as jnp
import numpy as np
from jax.experimental import pallas as pl
from jax.experimental.pallas import tpu as pltpu

LANE = 128


def _round_up(v, m):
    return (v + m - 1) // m * m


def _encoder_kernel(n_hidden, emb_pad, *refs):
    """refs = (x, [W_h(bf16), b_h(f32)] * n_hidden, W_head(bf16), b_head(f32), out).

    W_head = [W_mu | W_log_std] concatenated along the output dim (lane-padded).
    out    = [mu | std] concatenated along the output dim (lane-padded).
    """
    x_ref = refs[0]
    w_refs = refs[1:-1]
    out_ref = refs[-1]

    h = x_ref[...]  # f32 activations
    for i in range(n_hidden):
        w = w_refs[2 * i][...]          # bf16 (in_pad, out_pad)
        b = w_refs[2 * i + 1][...]      # f32  (1, out_pad)
        h = jnp.dot(h.astype(jnp.bfloat16), w, preferred_element_type=jnp.float32)
        h = jnp.maximum(h + b, 0.0)     # f32 epilogue (no bf16 elementwise on v5e)

    w_head = w_refs[2 * n_hidden][...]      # bf16 (hid_pad, 2*emb_pad)
    b_head = w_refs[2 * n_hidden + 1][...]  # f32  (1, 2*emb_pad)
    head = jnp.dot(h.astype(jnp.bfloat16), w_head,
                   preferred_element_type=jnp.float32) + b_head

    # Both stores are 128-lane aligned and unmasked.
    out_ref[:, :emb_pad] = head[:, :emb_pad]            # mu
    out_ref[:, emb_pad:] = jnp.exp(head[:, emb_pad:])   # std = exp(log_std)


def variational_encoder(x, params, *, tile_b=128):
    """params: dict with 'hidden' = [(W, b), ...], 'mu' = (W, b), 'log_std' = (W, b).
    Weights are (in, out) f32; biases are (1, out) f32. Returns (mu, std)."""
    B, F = x.shape
    emb = params["mu"][0].shape[1]
    emb_pad = _round_up(emb, LANE)
    n_hidden = len(params["hidden"])

    # Batch tiling: big tiles for MXU utilization; pad batch to a tile multiple.
    tile_b = min(tile_b, _round_up(B, 8))
    B_pad = _round_up(B, tile_b)
    if B_pad != B:
        x = jnp.pad(x, ((0, B_pad - B), (0, 0)))

    def pad2(a, rows, cols):
        return jnp.pad(a, ((0, rows - a.shape[0]), (0, cols - a.shape[1])))

    # Lane-pad all feature dims to multiples of 128; weights to bf16, biases f32.
    flat = []
    in_dim = F  # x keeps its native feature width (full-dim block is legal)
    for w, b in params["hidden"]:
        out_dim = _round_up(w.shape[1], LANE)
        flat.append(pad2(w, in_dim, out_dim).astype(jnp.bfloat16))
        flat.append(pad2(b, 1, out_dim))
        in_dim = out_dim

    w_mu, b_mu = params["mu"]
    w_ls, b_ls = params["log_std"]
    w_head = jnp.concatenate(
        [pad2(w_mu, in_dim, emb_pad), pad2(w_ls, in_dim, emb_pad)], axis=1
    ).astype(jnp.bfloat16)
    b_head = jnp.concatenate([pad2(b_mu, 1, emb_pad), pad2(b_ls, 1, emb_pad)], axis=1)
    flat += [w_head, b_head]

    grid = (B_pad // tile_b,)

    in_specs = [pl.BlockSpec((tile_b, F), lambda i: (i, 0))]
    for p in flat:
        # Constant index_map: each weight/bias is DMA'd once and stays resident.
        in_specs.append(pl.BlockSpec(p.shape, lambda i: (0, 0)))

    out_specs = pl.BlockSpec((tile_b, 2 * emb_pad), lambda i: (i, 0))
    out_shape = jax.ShapeDtypeStruct((B_pad, 2 * emb_pad), jnp.float32)

    kernel = functools.partial(_encoder_kernel, n_hidden, emb_pad)
    out = pl.pallas_call(
        kernel,
        grid=grid,
        in_specs=in_specs,
        out_specs=out_specs,
        out_shape=out_shape,
        compiler_params=pltpu.CompilerParams(
            dimension_semantics=("parallel",)),
    )(x, *flat)

    mu = out[:B, :emb]
    std = out[:B, emb_pad:emb_pad + emb]
    return mu, std


def init_params(key, input_size, hidden_size, emb_size):
    """Deterministic init mimicking torch.nn.Linear: U(-1/sqrt(fan_in), 1/sqrt(fan_in))."""
    layers_dim = [input_size] + list(hidden_size) + [emb_size]
    params = {"hidden": []}
    for i in range(len(layers_dim) - 2):
        fan_in, fan_out = layers_dim[i], layers_dim[i + 1]
        key, kw, kb = jax.random.split(key, 3)
        bound = 1.0 / np.sqrt(fan_in)
        w = jax.random.uniform(kw, (fan_in, fan_out), jnp.float32, -bound, bound)
        b = jax.random.uniform(kb, (1, fan_out), jnp.float32, -bound, bound)
        params["hidden"].append((w, b))
    fan_in = layers_dim[-2]
    bound = 1.0 / np.sqrt(fan_in)
    for name in ("mu", "log_std"):
        key, kw, kb = jax.random.split(key, 3)
        w = jax.random.uniform(kw, (fan_in, emb_size), jnp.float32, -bound, bound)
        b = jax.random.uniform(kb, (1, emb_size), jnp.float32, -bound, bound)
        params[name] = (w, b)
    return params


def reference_forward(x, params):
    """Pure-JAX reference with the same numerics as the kernel
    (bf16 matmul operands, f32 accumulation, f32 epilogue)."""
    def bdot(a, w):
        return jnp.dot(a.astype(jnp.bfloat16), w.astype(jnp.bfloat16),
                       preferred_element_type=jnp.float32)
    h = x
    for w, b in params["hidden"]:
        h = jnp.maximum(bdot(h, w) + b, 0.0)
    mu = bdot(h, params["mu"][0]) + params["mu"][1]
    log_std = bdot(h, params["log_std"][0]) + params["log_std"][1]
    return mu, jnp.exp(log_std)


if __name__ == "__main__":
    key = jax.random.PRNGKey(0)
    B, input_size, hidden_size, emb_size = 16, 32, (64, 64), 32

    key, kx, kp = jax.random.split(key, 3)
    x = jax.random.normal(kx, (B, input_size), jnp.float32)
    params = init_params(kp, input_size, hidden_size, emb_size)

    mu, std = variational_encoder(x, params, tile_b=128)
    mu, std = jax.block_until_ready((mu, std))

    mu_ref, std_ref = reference_forward(x, params)
    np.testing.assert_allclose(np.asarray(mu), np.asarray(mu_ref), rtol=2e-2, atol=2e-2)
    np.testing.assert_allclose(np.asarray(std), np.asarray(std_ref), rtol=2e-2, atol=2e-2)

    print("KERNEL_OK")
</pallas_src>

<mosaic_0001>
module attributes {stable_mosaic.version = 11 : i64} {
  func.func @_encoder_kernel(%arg0: i32, %arg1: memref<16x32xf32, #tpu.memory_space<vmem>>, %arg2: memref<32x128xbf16, #tpu.memory_space<vmem>>, %arg3: memref<1x128xf32, #tpu.memory_space<vmem>>, %arg4: memref<128x128xbf16, #tpu.memory_space<vmem>>, %arg5: memref<1x128xf32, #tpu.memory_space<vmem>>, %arg6: memref<128x256xbf16, #tpu.memory_space<vmem>>, %arg7: memref<1x256xf32, #tpu.memory_space<vmem>>, %arg8: memref<16x256xf32, #tpu.memory_space<vmem>>) attributes {dimension_semantics = [#tpu.dimension_semantics<parallel>], iteration_bounds = array<i64: 1>, scalar_prefetch = 0 : i64, scratch_operands = 0 : i64, tpu.core_type = #tpu.core_type<tc>, window_params = [{transform_indices = @transform_0, window_bounds = array<i64: 16, 32>}, {pipeline_mode = #tpu.pipeline_mode<synchronous>, transform_indices = @transform_1, window_bounds = array<i64: 32, 128>}, {pipeline_mode = #tpu.pipeline_mode<synchronous>, transform_indices = @transform_2, window_bounds = array<i64: 1, 128>}, {pipeline_mode = #tpu.pipeline_mode<synchronous>, transform_indices = @transform_3, window_bounds = array<i64: 128, 128>}, {pipeline_mode = #tpu.pipeline_mode<synchronous>, transform_indices = @transform_4, window_bounds = array<i64: 1, 128>}, {pipeline_mode = #tpu.pipeline_mode<synchronous>, transform_indices = @transform_5, window_bounds = array<i64: 128, 256>}, {pipeline_mode = #tpu.pipeline_mode<synchronous>, transform_indices = @transform_6, window_bounds = array<i64: 1, 256>}, {transform_indices = @transform_7, window_bounds = array<i64: 16, 256>}]} {
    %c0 = arith.constant 0 : index
    %c0_0 = arith.constant 0 : index
    %0 = vector.load %arg1[%c0, %c0_0] : memref<16x32xf32, #tpu.memory_space<vmem>>, vector<16x32xf32>
    %c0_1 = arith.constant 0 : index
    %c0_2 = arith.constant 0 : index
    %1 = vector.load %arg2[%c0_1, %c0_2] : memref<32x128xbf16, #tpu.memory_space<vmem>>, vector<32x128xbf16>
    %c0_3 = arith.constant 0 : index
    %c0_4 = arith.constant 0 : index
    %2 = vector.load %arg3[%c0_3, %c0_4] : memref<1x128xf32, #tpu.memory_space<vmem>>, vector<1x128xf32>
    %3 = arith.truncf %0 : vector<16x32xf32> to vector<16x32xbf16>
    %cst = arith.constant dense<0.000000e+00> : vector<16x128xf32>
    %4 = tpu.matmul %3, %1, %cst {dimension_numbers = #tpu.dot_dimension_numbers<[1], [0], [0], [1], [0, 0, 1, 1], [], []>} : vector<16x32xbf16>, vector<32x128xbf16>, vector<16x128xf32> -> vector<16x128xf32>
    %5 = vector.broadcast %2 : vector<1x128xf32> to vector<16x128xf32>
    %6 = arith.addf %4, %5 : vector<16x128xf32>
    %cst_5 = arith.constant 0.000000e+00 : f32
    %7 = vector.broadcast %cst_5 : f32 to vector<16x128xf32>
    %8 = arith.maximumf %6, %7 : vector<16x128xf32>
    %c0_6 = arith.constant 0 : index
    %c0_7 = arith.constant 0 : index
    %9 = vector.load %arg4[%c0_6, %c0_7] : memref<128x128xbf16, #tpu.memory_space<vmem>>, vector<128x128xbf16>
    %c0_8 = arith.constant 0 : index
    %c0_9 = arith.constant 0 : index
    %10 = vector.load %arg5[%c0_8, %c0_9] : memref<1x128xf32, #tpu.memory_space<vmem>>, vector<1x128xf32>
    %11 = arith.truncf %8 : vector<16x128xf32> to vector<16x128xbf16>
    %cst_10 = arith.constant dense<0.000000e+00> : vector<16x128xf32>
    %12 = tpu.matmul %11, %9, %cst_10 {dimension_numbers = #tpu.dot_dimension_numbers<[1], [0], [0], [1], [0, 0, 1, 1], [], []>} : vector<16x128xbf16>, vector<128x128xbf16>, vector<16x128xf32> -> vector<16x128xf32>
    %13 = vector.broadcast %10 : vector<1x128xf32> to vector<16x128xf32>
    %14 = arith.addf %12, %13 : vector<16x128xf32>
    %cst_11 = arith.constant 0.000000e+00 : f32
    %15 = vector.broadcast %cst_11 : f32 to vector<16x128xf32>
    %16 = arith.maximumf %14, %15 : vector<16x128xf32>
    %c0_12 = arith.constant 0 : index
    %c0_13 = arith.constant 0 : index
    %17 = vector.load %arg6[%c0_12, %c0_13] : memref<128x256xbf16, #tpu.memory_space<vmem>>, vector<128x256xbf16>
    %c0_14 = arith.constant 0 : index
    %c0_15 = arith.constant 0 : index
    %18 = vector.load %arg7[%c0_14, %c0_15] : memref<1x256xf32, #tpu.memory_space<vmem>>, vector<1x256xf32>
    %19 = arith.truncf %16 : vector<16x128xf32> to vector<16x128xbf16>
    %cst_16 = arith.constant dense<0.000000e+00> : vector<16x256xf32>
    %20 = tpu.matmul %19, %17, %cst_16 {dimension_numbers = #tpu.dot_dimension_numbers<[1], [0], [0], [1], [0, 0, 1, 1], [], []>} : vector<16x128xbf16>, vector<128x256xbf16>, vector<16x256xf32> -> vector<16x256xf32>
    %21 = vector.broadcast %18 : vector<1x256xf32> to vector<16x256xf32>
    %22 = arith.addf %20, %21 : vector<16x256xf32>
    %23 = vector.extract_strided_slice %22 {offsets = [0, 0], sizes = [16, 128], strides = [1, 1]} : vector<16x256xf32> to vector<16x128xf32>
    %c0_17 = arith.constant 0 : index
    %c0_18 = arith.constant 0 : index
    %24 = vector.load %arg8[%c0_17, %c0_18] : memref<16x256xf32, #tpu.memory_space<vmem>>, vector<16x128xf32>
    tpu.vector_store %arg8[%c0_17, %c0_18], %23 {strides = array<i32>} : memref<16x256xf32, #tpu.memory_space<vmem>>, vector<16x128xf32>,
    %25 = vector.extract_strided_slice %22 {offsets = [0, 128], sizes = [16, 128], strides = [1, 1]} : vector<16x256xf32> to vector<16x128xf32>
    %26 = math.exp %25 : vector<16x128xf32>
    %c0_19 = arith.constant 0 : index
    %c128 = arith.constant 128 : index
    %27 = vector.load %arg8[%c0_19, %c128] : memref<16x256xf32, #tpu.memory_space<vmem>>, vector<16x128xf32>
    tpu.vector_store %arg8[%c0_19, %c128], %26 {strides = array<i32>} : memref<16x256xf32, #tpu.memory_space<vmem>>, vector<16x128xf32>,
    return
  }
  func.func @transform_0(%arg0: i32) -> (i32, i32) {
    %c0_i32 = arith.constant 0 : i32
    %c0_i32_0 = arith.constant 0 : i32
    return %arg0, %c0_i32 : i32, i32
  }
  func.func @transform_1(%arg0: i32) -> (i32, i32) {
    %c0_i32 = arith.constant 0 : i32
    %c0_i32_0 = arith.constant 0 : i32
    %c0_i32_1 = arith.constant 0 : i32
    return %c0_i32, %c0_i32_0 : i32, i32
  }
  func.func @transform_2(%arg0: i32) -> (i32, i32) {
    %c0_i32 = arith.constant 0 : i32
    %c0_i32_0 = arith.constant 0 : i32
    %c0_i32_1 = arith.constant 0 : i32
    return %c0_i32, %c0_i32_0 : i32, i32
  }
  func.func @transform_3(%arg0: i32) -> (i32, i32) {
    %c0_i32 = arith.constant 0 : i32
    %c0_i32_0 = arith.constant 0 : i32
    %c0_i32_1 = arith.constant 0 : i32
    return %c0_i32, %c0_i32_0 : i32, i32
  }
  func.func @transform_4(%arg0: i32) -> (i32, i32) {
    %c0_i32 = arith.constant 0 : i32
    %c0_i32_0 = arith.constant 0 : i32
    %c0_i32_1 = arith.constant 0 : i32
    return %c0_i32, %c0_i32_0 : i32, i32
  }
  func.func @transform_5(%arg0: i32) -> (i32, i32) {
    %c0_i32 = arith.constant 0 : i32
    %c0_i32_0 = arith.constant 0 : i32
    %c0_i32_1 = arith.constant 0 : i32
    return %c0_i32, %c0_i32_0 : i32, i32
  }
  func.func @transform_6(%arg0: i32) -> (i32, i32) {
    %c0_i32 = arith.constant 0 : i32
    %c0_i32_0 = arith.constant 0 : i32
    %c0_i32_1 = arith.constant 0 : i32
    return %c0_i32, %c0_i32_0 : i32, i32
  }
  func.func @transform_7(%arg0: i32) -> (i32, i32) {
    %c0_i32 = arith.constant 0 : i32
    %c0_i32_0 = arith.constant 0 : i32
    return %arg0, %c0_i32 : i32, i32
  }
}

</mosaic_0001>

<llo_original>
// kernel: tpu_custom_call.1
$region0: #{tpu_custom_call.1}
  #allocation0 [shape = 'u32[]', space=smem, size = 0x4, offset = 0x4, fixed_abs, tag = 'smem constant byte address 0x4 - core index']
  #allocation1 [shape = 'u32[72,128]{1,0:T(1,128)}', space=vmem, size = 0x9000, scoped, tag = 'internal scratch']
  %s0 = inlined_call_operand.hbm [shape: f32[16,32], index: 0, kind: input, shape index: {}]
  %s1 = inlined_call_operand.hbm [shape: bf16[32,128], index: 1, kind: input, shape index: {}]
  %s2 = inlined_call_operand.vmem [shape: f32[1,128], index: 2, kind: input, shape index: {}]
  %s3 = inlined_call_operand.hbm [shape: bf16[128,128], index: 3, kind: input, shape index: {}]
  %s4 = inlined_call_operand.hbm [shape: f32[1,128], index: 4, kind: input, shape index: {}]
  %s5 = inlined_call_operand.hbm [shape: bf16[128,256], index: 5, kind: input, shape index: {}]
  %s6 = inlined_call_operand.vmem [shape: f32[1,256], index: 6, kind: input, shape index: {}]
  %s7 = inlined_call_operand.hbm [shape: f32[16,256], index: 7, kind: output, shape index: {}]
  %s8 = sld [smem:[#allocation0]]
  $region58: #{tpu_custom_call.1} parent=0
    _
  %s10 = ssub.s32 1, %s8
  %s11 = scalar_select 0, %s10, %s8
  $region1: #{tpu_custom_call.1} parent=0
    #allocation2 [shape = 'u8[8192]{0}', space=vmem, size = 0x2000, scoped, tag = 'input window, operand 0, single buffered']
    #allocation3 [shape = 's32[1]{0}', space=sflag, size = 0x4, scoped, tag = 'scoped memory for tpu_custom_call.1']
    #allocation4 [shape = 's32[1]{0}', space=sflag, size = 0x4, scoped, tag = 'scoped memory for tpu_custom_call.1']
    #allocation5 [shape = 'u8[8192]{0}', space=vmem, size = 0x2000, scoped, tag = 'input window, operand 1, single buffered']
    #allocation6 [shape = 's32[1]{0}', space=sflag, size = 0x4, scoped, tag = 'scoped memory for tpu_custom_call.1']
    #allocation7 [shape = 'u8[32768]{0}', space=vmem, size = 0x8000, scoped, tag = 'input window, operand 3, single buffered']
    #allocation8 [shape = 'u8[512]{0}', space=vmem, size = 0x400, scoped, tag = 'input window, operand 4, single buffered']
    #allocation9 [shape = 's32[1]{0}', space=sflag, size = 0x4, scoped, tag = 'scoped memory for tpu_custom_call.1']
    #allocation10 [shape = 'u8[65536]{0}', space=vmem, size = 0x10000, scoped, tag = 'input window, operand 5, single buffered']
    #allocation11 [shape = 'u8[16384]{0}', space=vmem, size = 0x4000, scoped, tag = 'output window, operand 0, single buffered']
    %12 = vsyncpa [#allocation3], 0
    %13 = vsyncpa [#allocation6], 0
    %14 = vsyncpa [#allocation9], 0
    %15 = vsyncpa [#allocation4], 0
    // Predicated region
    $region2: #{tpu_custom_call.1} parent=1 // pred_check
      _
    $region3: #{tpu_custom_call.1} parent=1 // pred_check_branch
      %17 = sbr.rel (0) target = $region5
    $region4: #{tpu_custom_call.1} parent=1 // pred_region
      %19 = vsyncadd [#allocation3], 0
      %s20 = sshll.u32 %s0, 4
      %s21 = int_to_ptr.hbm [resolvable:$true] %s20
      %s22 = sshll.u32 [#allocation2], 4
      %s23 = int_to_ptr.vmem [resolvable:$true] %s22
      %28 = dma.hbm_to_vmem [thread:$0]  %s21, 256, %s23, [#allocation3], 128, 128, 8
    $region5: #{tpu_custom_call.1} parent=1 // pred_fallthru
      _
    // Predicated region
    $region6: #{tpu_custom_call.1} parent=1 // pred_check
      _
    $region7: #{tpu_custom_call.1} parent=1 // pred_check_branch
      %30 = sbr.rel (0) target = $region9
    $region8: #{tpu_custom_call.1} parent=1 // pred_region
      %32 = vsyncadd [#allocation6], 0
      %s33 = sshll.u32 %s1, 4
      %s34 = int_to_ptr.hbm [resolvable:$true] %s33
      %s35 = sshll.u32 [#allocation5], 4
      %s36 = int_to_ptr.vmem [resolvable:$true] %s35
      %41 = dma.hbm_to_vmem [thread:$0]  %s34, 256, %s36, [#allocation6], 64, 64, 4
    $region9: #{tpu_custom_call.1} parent=1 // pred_fallthru
      _
    // Predicated region
    $region10: #{tpu_custom_call.1} parent=1 // pred_check
      _
    $region11: #{tpu_custom_call.1} parent=1 // pred_check_branch
      %43 = sbr.rel (0) target = $region13
    $region12: #{tpu_custom_call.1} parent=1 // pred_region
      _
    $region13: #{tpu_custom_call.1} parent=1 // pred_fallthru
      _
    // Predicated region
    $region14: #{tpu_custom_call.1} parent=1 // pred_check
      _
    $region15: #{tpu_custom_call.1} parent=1 // pred_check_branch
      %45 = sbr.rel (0) target = $region17
    $region16: #{tpu_custom_call.1} parent=1 // pred_region
      %47 = vsyncadd [#allocation6], 0
      %s48 = sshll.u32 %s3, 4
      %s49 = int_to_ptr.hbm [resolvable:$true] %s48
      %s50 = sshll.u32 [#allocation7], 4
      %s51 = int_to_ptr.vmem [resolvable:$true] %s50
      %56 = dma.hbm_to_vmem [thread:$0]  %s49, 1024, %s51, [#allocation6], 64, 64, 4
    $region17: #{tpu_custom_call.1} parent=1 // pred_fallthru
      _
    // Predicated region
    $region18: #{tpu_custom_call.1} parent=1 // pred_check
      _
    $region19: #{tpu_custom_call.1} parent=1 // pred_check_branch
      %58 = sbr.rel (0) target = $region21
    $region20: #{tpu_custom_call.1} parent=1 // pred_region
      %60 = vsyncadd [#allocation9], 0
      %s62 = sshll.u32 %s4, 4
      %s63 = int_to_ptr.hbm [resolvable:$true] %s62
      %s64 = sshll.u32 [#allocation8], 4
      %s65 = int_to_ptr.vmem [resolvable:$true] %s64
      %67 = dma.hbm_to_vmem [thread:$0]  %s63, 16, %s65, [#allocation9]
    $region21: #{tpu_custom_call.1} parent=1 // pred_fallthru
      _
    // Predicated region
    $region22: #{tpu_custom_call.1} parent=1 // pred_check
      _
    $region23: #{tpu_custom_call.1} parent=1 // pred_check_branch
      %69 = sbr.rel (0) target = $region25
    $region24: #{tpu_custom_call.1} parent=1 // pred_region
      %71 = vsyncadd [#allocation9], 0
      %s72 = sshll.u32 %s5, 4
      %s73 = int_to_ptr.hbm [resolvable:$true] %s72
      %s74 = sshll.u32 [#allocation10], 4
      %s75 = int_to_ptr.vmem [resolvable:$true] %s74
      %80 = dma.hbm_to_vmem [thread:$0]  %s73, 2048, %s75, [#allocation9], 128, 128, 8
    $region25: #{tpu_custom_call.1} parent=1 // pred_fallthru
      _
    // Predicated region
    $region26: #{tpu_custom_call.1} parent=1 // pred_check
      _
    $region27: #{tpu_custom_call.1} parent=1 // pred_check_branch
      %82 = sbr.rel (0) target = $region29
    $region28: #{tpu_custom_call.1} parent=1 // pred_region
      _
    $region29: #{tpu_custom_call.1} parent=1 // pred_fallthru
      _
    // Predicated region
    $region30: #{tpu_custom_call.1} parent=1 // pred_check
      _
    $region31: #{tpu_custom_call.1} parent=1 // pred_check_branch
      %84 = sbr.rel (0) target = $region33
    $region32: #{tpu_custom_call.1} parent=1 // pred_region
      %86 = dma.done [#allocation3], 256
    $region33: #{tpu_custom_call.1} parent=1 // pred_fallthru
      _
    // Predicated region
    $region34: #{tpu_custom_call.1} parent=1 // pred_check
      _
    $region35: #{tpu_custom_call.1} parent=1 // pred_check_branch
      %88 = sbr.rel (0) target = $region37
    $region36: #{tpu_custom_call.1} parent=1 // pred_region
      %90 = dma.done [#allocation6], 256
    $region37: #{tpu_custom_call.1} parent=1 // pred_fallthru
      _
    // Predicated region
    $region38: #{tpu_custom_call.1} parent=1 // pred_check
      _
    $region39: #{tpu_custom_call.1} parent=1 // pred_check_branch
      %92 = sbr.rel (0) target = $region41
    $region40: #{tpu_custom_call.1} parent=1 // pred_region
      %94 = dma.done [#allocation6], 1024
    $region41: #{tpu_custom_call.1} parent=1 // pred_fallthru
      _
    // Predicated region
    $region42: #{tpu_custom_call.1} parent=1 // pred_check
      _
    $region43: #{tpu_custom_call.1} parent=1 // pred_check_branch
      %96 = sbr.rel (0) target = $region45
    $region44: #{tpu_custom_call.1} parent=1 // pred_region
      %98 = dma.done [#allocation9], 16
    $region45: #{tpu_custom_call.1} parent=1 // pred_fallthru
      _
    // Predicated region
    $region46: #{tpu_custom_call.1} parent=1 // pred_check
      _
    $region47: #{tpu_custom_call.1} parent=1 // pred_check_branch
      %100 = sbr.rel (0) target = $region49
    $region48: #{tpu_custom_call.1} parent=1 // pred_region
      %102 = dma.done [#allocation9], 2048
    $region49: #{tpu_custom_call.1} parent=1 // pred_fallthru
      _
    %v104 = vld [vmem:[#allocation2] sm:$0xff]
    %v105 = vld [vmem:[#allocation2 + $0x8] sm:$0xff]
    %v106 = vld [vmem:[#allocation5] sm:$0xf]
    %v107 = vld [vmem:[#allocation5 + $0x4] sm:$0xf]
    %v108 = vld [vmem:[#allocation5 + $0x8] sm:$0xf]
    %v109 = vld [vmem:[#allocation5 + $0xc] sm:$0xf]
    %v110 = vld [vmem:[%s2] sm:$0x1]
    %v111 = vpack.c.bf16 %v105, %v104
    %v113 = vperm.slane %v110, 0
    %v119 = vunpack.c.l.b16 %v106
    %v120 = vunpack.c.l.b16 %v107
    %v121 = vunpack.c.l.b16 %v108
    %v122 = vunpack.c.l.b16 %v109
    %v123 = vpack.c.b16 %v120, %v119
    %v124 = vpack.c.b16 %v122, %v121
    %vm127 = vcmask 261120
    %v129 = vsel %vm127, %v111, 0
    %131 = vmatpush.bf16.msra.mxu0 0
    %132 = vmatpush.bf16.msra.mxu0 0
    %133 = vmatpush.bf16.msra.mxu0 0
    %134 = vmatpush.bf16.msra.mxu0 0
    %135 = vmatpush.bf16.msra.mxu0 0
    %136 = vmatpush.bf16.msra.mxu0 0
    %137 = vmatpush.bf16.msra.mxu0 %v124
    %138 = vmatpush.bf16.msra.mxu0 %v123
    %139 = vmatmul.bf16.gmra.mxu0 %v129
    %v140 = vpop.f32.mrf.mxu0
    %v141 = vadd.f32 %v113, %v140
    %v142 = vpop.f32.mrf.mxu0
    %v143 = vadd.f32 %v113, %v142
    %144 = vdwg.mxu0
    %v145 = vmax.f32 %v141, 0.0
    %v146 = vmax.f32 %v143, 0.0
    %v147 = vld [vmem:[#allocation7] sm:$0xf]
    %v148 = vld [vmem:[#allocation7 + $0x4] sm:$0xf]
    %v149 = vld [vmem:[#allocation7 + $0x8] sm:$0xf]
    %v150 = vld [vmem:[#allocation7 + $0xc] sm:$0xf]
    %v151 = vld [vmem:[#allocation7 + $0x10] sm:$0xf]
    %v152 = vld [vmem:[#allocation7 + $0x14] sm:$0xf]
    %v153 = vld [vmem:[#allocation7 + $0x18] sm:$0xf]
    %v154 = vld [vmem:[#allocation7 + $0x1c] sm:$0xf]
    %v155 = vld [vmem:[#allocation7 + $0x20] sm:$0xf]
    %v156 = vld [vmem:[#allocation7 + $0x24] sm:$0xf]
    %v157 = vld [vmem:[#allocation7 + $0x28] sm:$0xf]
    %v158 = vld [vmem:[#allocation7 + $0x2c] sm:$0xf]
    %v159 = vld [vmem:[#allocation7 + $0x30] sm:$0xf]
    %v160 = vld [vmem:[#allocation7 + $0x34] sm:$0xf]
    %v161 = vld [vmem:[#allocation7 + $0x38] sm:$0xf]
    %v162 = vld [vmem:[#allocation7 + $0x3c] sm:$0xf]
    %v163 = vld [vmem:[#allocation8] sm:$0x1]
    %v164 = vpack.c.bf16 %v146, %v145
    %v166 = vperm.slane %v163, 0
    %v184 = vunpack.c.l.b16 %v147
    %v185 = vunpack.c.l.b16 %v148
    %v186 = vunpack.c.l.b16 %v149
    %v187 = vunpack.c.l.b16 %v150
    %v188 = vunpack.c.l.b16 %v151
    %v189 = vunpack.c.l.b16 %v152
    %v190 = vunpack.c.l.b16 %v153
    %v191 = vunpack.c.l.b16 %v154
    %v192 = vunpack.c.l.b16 %v155
    %v193 = vunpack.c.l.b16 %v156
    %v194 = vunpack.c.l.b16 %v157
    %v195 = vunpack.c.l.b16 %v158
    %v196 = vunpack.c.l.b16 %v159
    %v197 = vunpack.c.l.b16 %v160
    %v198 = vunpack.c.l.b16 %v161
    %v199 = vunpack.c.l.b16 %v162
    %v200 = vpack.c.b16 %v185, %v184
    %v201 = vpack.c.b16 %v187, %v186
    %v202 = vpack.c.b16 %v189, %v188
    %v203 = vpack.c.b16 %v191, %v190
    %v204 = vpack.c.b16 %v193, %v192
    %v205 = vpack.c.b16 %v195, %v194
    %v206 = vpack.c.b16 %v197, %v196
    %v207 = vpack.c.b16 %v199, %v198
    %216 = vmatpush.bf16.msra.mxu0 %v207
    %217 = vmatpush.bf16.msra.mxu0 %v206
    %218 = vmatpush.bf16.msra.mxu0 %v205
    %219 = vmatpush.bf16.msra.mxu0 %v204
    %220 = vmatpush.bf16.msra.mxu0 %v203
    %221 = vmatpush.bf16.msra.mxu0 %v202
    %222 = vmatpush.bf16.msra.mxu0 %v201
    %223 = vmatpush.bf16.msra.mxu0 %v200
    %224 = vmatmul.bf16.gmra.mxu0 %v164
    %v225 = vpop.f32.mrf.mxu0
    %v226 = vadd.f32 %v166, %v225
    %v227 = vpop.f32.mrf.mxu0
    %v228 = vadd.f32 %v166, %v227
    %229 = vdwg.mxu0
    %v230 = vmax.f32 %v226, 0.0
    %v231 = vmax.f32 %v228, 0.0
    %v232 = vld [vmem:[#allocation10] sm:$0xff]
    %v233 = vld [vmem:[#allocation10 + $0x8] sm:$0xff]
    %v234 = vld [vmem:[#allocation10 + $0x10] sm:$0xff]
    %v235 = vld [vmem:[#allocation10 + $0x18] sm:$0xff]
    %v236 = vld [vmem:[#allocation10 + $0x20] sm:$0xff]
    %v237 = vld [vmem:[#allocation10 + $0x28] sm:$0xff]
    %v238 = vld [vmem:[#allocation10 + $0x30] sm:$0xff]
    %v239 = vld [vmem:[#allocation10 + $0x38] sm:$0xff]
    %v240 = vld [vmem:[#allocation10 + $0x40] sm:$0xff]
    %v241 = vld [vmem:[#allocation10 + $0x48] sm:$0xff]
    %v242 = vld [vmem:[#allocation10 + $0x50] sm:$0xff]
    %v243 = vld [vmem:[#allocation10 + $0x58] sm:$0xff]
    %v244 = vld [vmem:[#allocation10 + $0x60] sm:$0xff]
    %v245 = vld [vmem:[#allocation10 + $0x68] sm:$0xff]
    %v246 = vld [vmem:[#allocation10 + $0x70] sm:$0xff]
    %v247 = vld [vmem:[#allocation10 + $0x78] sm:$0xff]
    %v248 = vld [vmem:[%s6] sm:$0x3]
    %v249 = vpack.c.bf16 %v231, %v230
    %v251 = vperm.slane %v248, 0
    %v252 = vperm.slane %v248, 1
    %v271 = vunpack.c.l.b16 %v232
    %v272 = vunpack.c.h.b16 %v232
    %v273 = vunpack.c.l.b16 %v233
    %v274 = vunpack.c.h.b16 %v233
    %v275 = vunpack.c.l.b16 %v234
    %v276 = vunpack.c.h.b16 %v234
    %v277 = vunpack.c.l.b16 %v235
    %v278 = vunpack.c.h.b16 %v235
    %v279 = vunpack.c.l.b16 %v236
    %v280 = vunpack.c.h.b16 %v236
    %v281 = vunpack.c.l.b16 %v237
    %v282 = vunpack.c.h.b16 %v237
    %v283 = vunpack.c.l.b16 %v238
    %v284 = vunpack.c.h.b16 %v238
    %v285 = vunpack.c.l.b16 %v239
    %v286 = vunpack.c.h.b16 %v239
    %v287 = vunpack.c.l.b16 %v240
    %v288 = vunpack.c.h.b16 %v240
    %v289 = vunpack.c.l.b16 %v241
    %v290 = vunpack.c.h.b16 %v241
    %v291 = vunpack.c.l.b16 %v242
    %v292 = vunpack.c.h.b16 %v242
    %v293 = vunpack.c.l.b16 %v243
    %v294 = vunpack.c.h.b16 %v243
    %v295 = vunpack.c.l.b16 %v244
    %v296 = vunpack.c.h.b16 %v244
    %v297 = vunpack.c.l.b16 %v245
    %v298 = vunpack.c.h.b16 %v245
    %v299 = vunpack.c.l.b16 %v246
    %v300 = vunpack.c.h.b16 %v246
    %v301 = vunpack.c.l.b16 %v247
    %v302 = vunpack.c.h.b16 %v247
    %v303 = vpack.c.b16 %v273, %v271
    %v304 = vpack.c.b16 %v274, %v272
    %v305 = vpack.c.b16 %v277, %v275
    %v306 = vpack.c.b16 %v278, %v276
    %v307 = vpack.c.b16 %v281, %v279
    %v308 = vpack.c.b16 %v282, %v280
    %v309 = vpack.c.b16 %v285, %v283
    %v310 = vpack.c.b16 %v286, %v284
    %v311 = vpack.c.b16 %v289, %v287
    %v312 = vpack.c.b16 %v290, %v288
    %v313 = vpack.c.b16 %v293, %v291
    %v314 = vpack.c.b16 %v294, %v292
    %v315 = vpack.c.b16 %v297, %v295
    %v316 = vpack.c.b16 %v298, %v296
    %v317 = vpack.c.b16 %v301, %v299
    %v318 = vpack.c.b16 %v302, %v300
    %335 = vmatpush.bf16.msra.mxu0 %v317
    %336 = vmatpush.bf16.msra.mxu0 %v315
    %337 = vmatpush.bf16.msra.mxu0 %v313
    %338 = vmatpush.bf16.msra.mxu0 %v311
    %339 = vmatpush.bf16.msra.mxu0 %v309
    %340 = vmatpush.bf16.msra.mxu0 %v307
    %341 = vmatpush.bf16.msra.mxu0 %v305
    %342 = vmatpush.bf16.msra.mxu0 %v303
    %343 = vmatmul.bf16.gmra.mxu0 %v249
    %v344 = vpop.f32.mrf.mxu0
    %v345 = vadd.f32 %v251, %v344
    %v346 = vpop.f32.mrf.mxu0
    %v347 = vadd.f32 %v251, %v346
    %348 = vdwg.mxu0
    %349 = vmatpush.bf16.msra.mxu0 %v318
    %350 = vmatpush.bf16.msra.mxu0 %v316
    %351 = vmatpush.bf16.msra.mxu0 %v314
    %352 = vmatpush.bf16.msra.mxu0 %v312
    %353 = vmatpush.bf16.msra.mxu0 %v310
    %354 = vmatpush.bf16.msra.mxu0 %v308
    %355 = vmatpush.bf16.msra.mxu0 %v306
    %356 = vmatpush.bf16.msra.mxu0 %v304
    %357 = vmatmul.bf16.gmra.mxu0 %v249
    %v358 = vpop.f32.mrf.mxu0
    %v359 = vadd.f32 %v252, %v358
    %v360 = vpop.f32.mrf.mxu0
    %v361 = vadd.f32 %v252, %v360
    %362 = vdwg.mxu0
    %363 = vst [vmem:[#allocation11] sm:$0xff] %v345
    %364 = vst [vmem:[#allocation11 + $0x10] sm:$0xff] %v347
    %v365 = vmul.f32 %v359, 1.442695
    %v366 = vpow.pop %v365
    %v367 = vmul.f32 %v361, 1.442695
    %v368 = vpow.pop %v367
    %369 = vst [vmem:[#allocation11 + $0x8] sm:$0xff] %v366
    %370 = vst [vmem:[#allocation11 + $0x18] sm:$0xff] %v368
    // Predicated region
    $region50: #{tpu_custom_call.1} parent=1 // pred_check
      _
    $region51: #{tpu_custom_call.1} parent=1 // pred_check_branch
      %372 = sbr.rel (0) target = $region53
    $region52: #{tpu_custom_call.1} parent=1 // pred_region
      %374 = vsyncadd [#allocation4], 0
      %s375 = sshll.u32 [#allocation11], 4
      %s376 = int_to_ptr.vmem [resolvable:$true] %s375
      %s377 = sshll.u32 %s7, 4
      %s378 = int_to_ptr.hbm [resolvable:$true] %s377
      %383 = dma.vmem_to_hbm [thread:$0]  %s376, 512, %s378, [#allocation4], 256, 256, 16
    $region53: #{tpu_custom_call.1} parent=1 // pred_fallthru
      _
    // Predicated region
    $region54: #{tpu_custom_call.1} parent=1 // pred_check
      _
    $region55: #{tpu_custom_call.1} parent=1 // pred_check_branch
      %385 = sbr.rel (0) target = $region57
    $region56: #{tpu_custom_call.1} parent=1 // pred_region
      %387 = dma.done [#allocation4], 512
    $region57: #{tpu_custom_call.1} parent=1 // pred_fallthru
      _
    %388 = vsyncpa [#allocation3], 1
    %389 = vsyncpa [#allocation6], 1
    %390 = vsyncpa [#allocation9], 1
    %391 = vsyncpa [#allocation4], 1

</llo_original>
